<compile_context>
chip_gen: v5e
topology: v5e:2x2
jax: 0.10.0
libtpu: 0.0.40
codegen_flags: <defaults>
</compile_context>

<pallas_src>
import functools

import jax
import jax.numpy as jnp
import numpy as np
from jax import lax
from jax.experimental import pallas as pl
from jax.experimental.pallas import tpu as pltpu


def _fused_conv_kernel(x_ref, w_ref, b_ref, o_ref, *, k_max, seq, bt):
    # x_ref: (Bt, Sp, D)       bf16, max-halo-padded activations for this batch chunk
    # w_ref: (k_max*D, Np)     bf16, fused per-tap weights (resident across grid steps)
    # b_ref: (1, Np)           f32,  fused bias (zero-padded lanes)
    # o_ref: (Bt*S, Np)        f32,  lane-dense fused output rows
    d = x_ref.shape[-1]
    # im2col over taps inside VMEM: one K = k_max*D contraction instead of k_max tiny dots.
    cols = jnp.concatenate([x_ref[:, dk:dk + seq, :] for dk in range(k_max)], axis=-1)
    cols = cols.reshape(bt * seq, k_max * d)                      # (Bt*S, k_max*D), bf16
    acc = jnp.dot(cols, w_ref[...], preferred_element_type=jnp.float32)
    acc = acc + b_ref[...]                                        # f32 bias broadcast
    o_ref[...] = jnp.maximum(acc, 0.0).astype(o_ref.dtype)        # f32 ReLU epilogue


def _pick_batch_tile(batch, seq):
    """Batch chunk Bt: aim Bt*seq >= 128 (fill the MXU M tile) while dividing the batch."""
    target = max(1, -(-128 // seq))
    bt = min(batch, target)
    while batch % bt:
        bt -= 1
    return bt


def fuse_conv_params(weights_oihw, biases, ks, lane_multiple=128):
    """Build fused (k_max*D, Np) bf16 weights + (1, Np) f32 bias ONCE (outside the forward)."""
    ks = tuple(ks)
    assert all(k % 2 == 1 for k in ks), "ConvMultiKernel assumes odd kernel sizes"
    k_max = max(ks)
    c_out, c_in, _, feat = weights_oihw[0].shape
    d = c_in * feat
    n_out = len(ks) * c_out
    n_pad = max(lane_multiple, ((n_out + lane_multiple - 1) // lane_multiple) * lane_multiple)

    w_fused = jnp.zeros((k_max, d, n_pad), jnp.float32)
    for b_idx, (k, w_t) in enumerate(zip(ks, weights_oihw)):
        off = (k_max - k) // 2                       # center-align the smaller kernel's taps
        # (Co, Cin, k, F) -> (k, Cin, F, Co) -> (k, Cin*F, Co); matches x flattening c*F + f.
        w = jnp.transpose(w_t, (2, 1, 3, 0)).reshape(k, d, c_out)
        w_fused = w_fused.at[off:off + k, :, b_idx * c_out:(b_idx + 1) * c_out].set(w)
    w_fused = w_fused.reshape(k_max * d, n_pad).astype(jnp.bfloat16)

    b_fused = jnp.zeros((1, n_pad), jnp.float32)
    b_fused = b_fused.at[0, :n_out].set(jnp.concatenate(biases))
    return w_fused, b_fused


def conv_multi_forward(x_nchw, w_fused, b_fused, ks, c_out):
    """x_nchw: (B, C_in, S, F). Returns (B, len(ks)*C_out, S), matching the PyTorch module."""
    ks = tuple(ks)
    k_max = max(ks)
    n_out = len(ks) * c_out
    B, C, S, F = x_nchw.shape
    D = C * F
    KD, Np = w_fused.shape
    assert KD == k_max * D
    pad = k_max // 2
    Sp = S + 2 * pad

    # (B, C, S, F) -> (B, S, C*F); single max-halo pad shared by all k; bf16 cast in-wrapper.
    x_flat = jnp.transpose(x_nchw, (0, 2, 1, 3)).reshape(B, S, D)
    x_pad = jnp.pad(x_flat, ((0, 0), (pad, pad), (0, 0))).astype(jnp.bfloat16)

    bt = _pick_batch_tile(B, S)
    n_chunks = B // bt

    # Advisory cost hint: useful (non-zero-padded) conv FLOPs and actual DMA bytes (bf16 in).
    flops = 2 * B * S * D * c_out * sum(ks)
    bytes_accessed = 2 * (x_pad.size + w_fused.size) + 4 * (b_fused.size + B * S * Np)

    out2d = pl.pallas_call(
        functools.partial(_fused_conv_kernel, k_max=k_max, seq=S, bt=bt),
        out_shape=jax.ShapeDtypeStruct((B * S, Np), jnp.float32),
        grid=(n_chunks,),
        in_specs=[
            pl.BlockSpec((bt, Sp, D), lambda i: (i, 0, 0)),   # batch-chunked activations
            pl.BlockSpec((KD, Np), lambda i: (0, 0)),         # weights resident across steps
            pl.BlockSpec((1, Np), lambda i: (0, 0)),          # bias resident across steps
        ],
        out_specs=pl.BlockSpec((bt * S, Np), lambda i: (i, 0)),
        compiler_params=pltpu.CompilerParams(dimension_semantics=("parallel",)),
        cost_estimate=pl.CostEstimate(flops=flops, transcendentals=0,
                                      bytes_accessed=bytes_accessed),
    )(x_pad, w_fused, b_fused)

    # Slice away the zero-padded lanes and move to the PyTorch (B, n_out, S) convention.
    out = out2d.reshape(B, S, Np)[..., :n_out]
    return jnp.transpose(out, (0, 2, 1))


def _reference(x_nchw, weights_oihw, biases, ks):
    """Independent reference via lax.conv_general_dilated (mirrors torch Conv2d + relu)."""
    outs = []
    for k, w, b in zip(ks, weights_oihw, biases):
        y = lax.conv_general_dilated(
            x_nchw, w, window_strides=(1, 1),
            padding=((k // 2, k // 2), (0, 0)),
            dimension_numbers=("NCHW", "OIHW", "NCHW"),
        )
        y = y + b.reshape(1, -1, 1, 1)
        y = jnp.maximum(y, 0.0)
        outs.append(jnp.squeeze(y, axis=-1))          # (B, Co, S)
    return jnp.concatenate(outs, axis=1)


if __name__ == "__main__":
    # Module hyper-params: ConvMultiKernel(in_channels=4, out_channels=8, kernels=3, feature_dim=32)
    B, C_in, S, F = 2, 4, 16, 32
    C_out = 8
    num_kernels = 3
    ks = tuple(range(1, 1 + 2 * num_kernels, 2))       # (1, 3, 5)

    key = jax.random.PRNGKey(0)
    kx, *kws = jax.random.split(key, 1 + 2 * len(ks))

    x = jax.random.normal(kx, (B, C_in, S, F), dtype=jnp.float32)

    weights, biases = [], []
    for i, k in enumerate(ks):
        fan_in = C_in * k * F
        bound = 1.0 / np.sqrt(fan_in)
        w = jax.random.uniform(kws[2 * i], (C_out, C_in, k, F),
                               minval=-bound, maxval=bound, dtype=jnp.float32)
        b = jax.random.uniform(kws[2 * i + 1], (C_out,),
                               minval=-bound, maxval=bound, dtype=jnp.float32)
        weights.append(w)
        biases.append(b)

    # Fused params built ONCE (hoisted out of the per-forward trace).
    w_fused, b_fused = fuse_conv_params(weights, biases, ks)

    fwd = jax.jit(conv_multi_forward, static_argnums=(3, 4))
    out = jax.block_until_ready(fwd(x, w_fused, b_fused, ks, C_out))

    ref = jax.block_until_ready(_reference(x, weights, biases, ks))
    assert out.shape == (B, len(ks) * C_out, S), out.shape
    # bf16 MXU operands with f32 accumulation: slightly looser tolerance than pure f32.
    # (Not bit-comparable to PyTorch's f32 Conv2d; intended for inference.)
    np.testing.assert_allclose(np.asarray(out), np.asarray(ref), rtol=2e-2, atol=2e-2)

    print("KERNEL_OK")
</pallas_src>

<mosaic_0001>
module attributes {stable_mosaic.version = 11 : i64} {
  func.func @_fused_conv_kernel(%arg0: i32, %arg1: memref<2x20x128xbf16, #tpu.memory_space<vmem>>, %arg2: memref<640x128xbf16, #tpu.memory_space<vmem>>, %arg3: memref<1x128xf32, #tpu.memory_space<vmem>>, %arg4: memref<32x128xf32, #tpu.memory_space<vmem>>) attributes {dimension_semantics = [#tpu.dimension_semantics<parallel>], iteration_bounds = array<i64: 1>, scalar_prefetch = 0 : i64, scratch_operands = 0 : i64, tpu.core_type = #tpu.core_type<tc>, window_params = [{transform_indices = @transform_0, window_bounds = array<i64: 2, 20, 128>}, {pipeline_mode = #tpu.pipeline_mode<synchronous>, transform_indices = @transform_1, window_bounds = array<i64: 640, 128>}, {pipeline_mode = #tpu.pipeline_mode<synchronous>, transform_indices = @transform_2, window_bounds = array<i64: 1, 128>}, {transform_indices = @transform_3, window_bounds = array<i64: 32, 128>}]} {
    %c0 = arith.constant 0 : index
    %c0_0 = arith.constant 0 : index
    %c0_1 = arith.constant 0 : index
    %0 = vector.load %arg1[%c0, %c0_0, %c0_1] : memref<2x20x128xbf16, #tpu.memory_space<vmem>>, vector<2x16x128xbf16>
    %c0_2 = arith.constant 0 : index
    %c1 = arith.constant 1 : index
    %c0_3 = arith.constant 0 : index
    %1 = vector.load %arg1[%c0_2, %c1, %c0_3] : memref<2x20x128xbf16, #tpu.memory_space<vmem>>, vector<2x16x128xbf16>
    %c0_4 = arith.constant 0 : index
    %c2 = arith.constant 2 : index
    %c0_5 = arith.constant 0 : index
    %2 = vector.load %arg1[%c0_4, %c2, %c0_5] : memref<2x20x128xbf16, #tpu.memory_space<vmem>>, vector<2x16x128xbf16>
    %c0_6 = arith.constant 0 : index
    %c3 = arith.constant 3 : index
    %c0_7 = arith.constant 0 : index
    %3 = vector.load %arg1[%c0_6, %c3, %c0_7] : memref<2x20x128xbf16, #tpu.memory_space<vmem>>, vector<2x16x128xbf16>
    %c0_8 = arith.constant 0 : index
    %c4 = arith.constant 4 : index
    %c0_9 = arith.constant 0 : index
    %4 = vector.load %arg1[%c0_8, %c4, %c0_9] : memref<2x20x128xbf16, #tpu.memory_space<vmem>>, vector<2x16x128xbf16>
    %5 = tpu.concatenate %0, %1, %2, %3, %4 in 2 : vector<2x16x128xbf16>, vector<2x16x128xbf16>, vector<2x16x128xbf16>, vector<2x16x128xbf16>, vector<2x16x128xbf16> -> vector<2x16x640xbf16>
    %6 = vector.shape_cast %5 : vector<2x16x640xbf16> to vector<32x640xbf16>
    %c0_10 = arith.constant 0 : index
    %c0_11 = arith.constant 0 : index
    %7 = vector.load %arg2[%c0_10, %c0_11] : memref<640x128xbf16, #tpu.memory_space<vmem>>, vector<640x128xbf16>
    %cst = arith.constant dense<0.000000e+00> : vector<32x128xf32>
    %8 = tpu.matmul %6, %7, %cst {dimension_numbers = #tpu.dot_dimension_numbers<[1], [0], [0], [1], [0, 0, 1, 1], [], []>} : vector<32x640xbf16>, vector<640x128xbf16>, vector<32x128xf32> -> vector<32x128xf32>
    %c0_12 = arith.constant 0 : index
    %c0_13 = arith.constant 0 : index
    %9 = vector.load %arg3[%c0_12, %c0_13] : memref<1x128xf32, #tpu.memory_space<vmem>>, vector<1x128xf32>
    %10 = vector.broadcast %9 : vector<1x128xf32> to vector<32x128xf32>
    %11 = arith.addf %8, %10 : vector<32x128xf32>
    %cst_14 = arith.constant 0.000000e+00 : f32
    %12 = vector.broadcast %cst_14 : f32 to vector<32x128xf32>
    %13 = arith.maximumf %11, %12 : vector<32x128xf32>
    %c0_15 = arith.constant 0 : index
    %c0_16 = arith.constant 0 : index
    %14 = vector.load %arg4[%c0_15, %c0_16] : memref<32x128xf32, #tpu.memory_space<vmem>>, vector<32x128xf32>
    tpu.vector_store %arg4[%c0_15, %c0_16], %13 {strides = array<i32>} : memref<32x128xf32, #tpu.memory_space<vmem>>, vector<32x128xf32>,
    return
  }
  func.func @transform_0(%arg0: i32) -> (i32, i32, i32) {
    %c0_i32 = arith.constant 0 : i32
    %c0_i32_0 = arith.constant 0 : i32
    %c0_i32_1 = arith.constant 0 : i32
    return %arg0, %c0_i32, %c0_i32_0 : i32, i32, i32
  }
  func.func @transform_1(%arg0: i32) -> (i32, i32) {
    %c0_i32 = arith.constant 0 : i32
    %c0_i32_0 = arith.constant 0 : i32
    %c0_i32_1 = arith.constant 0 : i32
    return %c0_i32, %c0_i32_0 : i32, i32
  }
  func.func @transform_2(%arg0: i32) -> (i32, i32) {
    %c0_i32 = arith.constant 0 : i32
    %c0_i32_0 = arith.constant 0 : i32
    %c0_i32_1 = arith.constant 0 : i32
    return %c0_i32, %c0_i32_0 : i32, i32
  }
  func.func @transform_3(%arg0: i32) -> (i32, i32) {
    %c0_i32 = arith.constant 0 : i32
    %c0_i32_0 = arith.constant 0 : i32
    return %arg0, %c0_i32 : i32, i32
  }
}

</mosaic_0001>

<llo_original>
// kernel: conv_multi_forward.1
$region0: #{conv_multi_forward.1}
  #allocation0 [shape = 'u32[]', space=smem, size = 0x4, offset = 0x4, fixed_abs, tag = 'smem constant byte address 0x4 - core index']
  #allocation1 [shape = 'u32[72,128]{1,0:T(1,128)}', space=vmem, size = 0x9000, scoped, tag = 'internal scratch']
  %s0 = inlined_call_operand.vmem [shape: bf16[2,20,128], index: 0, kind: input, shape index: {}]
  %s1 = inlined_call_operand.vmem [shape: bf16[640,128], index: 1, kind: input, shape index: {}]
  %s2 = inlined_call_operand.vmem [shape: f32[1,128], index: 2, kind: input, shape index: {}]
  %s3 = inlined_call_operand.vmem [shape: f32[32,128], index: 3, kind: output, shape index: {}]
  %s4 = sld [smem:[#allocation0]]
  $region22: #{conv_multi_forward.1} parent=0
    _
  %s6 = ssub.s32 1, %s4
  %s7 = scalar_select 0, %s6, %s4
  // Predicated region
  $region2: #{conv_multi_forward.1} parent=0 // pred_check
    _
  $region3: #{conv_multi_forward.1} parent=0 // pred_check_branch
    %9 = sbr.rel (0) target = $region5
  $region4: #{conv_multi_forward.1} parent=0 // pred_region
    _
  $region5: #{conv_multi_forward.1} parent=0 // pred_fallthru
    _
  // Predicated region
  $region6: #{conv_multi_forward.1} parent=0 // pred_check
    _
  $region7: #{conv_multi_forward.1} parent=0 // pred_check_branch
    %11 = sbr.rel (0) target = $region9
  $region8: #{conv_multi_forward.1} parent=0 // pred_region
    _
  $region9: #{conv_multi_forward.1} parent=0 // pred_fallthru
    _
  // Predicated region
  $region10: #{conv_multi_forward.1} parent=0 // pred_check
    _
  $region11: #{conv_multi_forward.1} parent=0 // pred_check_branch
    %13 = sbr.rel (0) target = $region13
  $region12: #{conv_multi_forward.1} parent=0 // pred_region
    _
  $region13: #{conv_multi_forward.1} parent=0 // pred_fallthru
    _
  %v14 = vld [vmem:[%s0] sm:$0xf]
  %v15 = vld [vmem:[%s0 + $0x4] sm:$0xf]
  %v16 = vld [vmem:[%s0 + $0xc] sm:$0xf]
  %v17 = vld [vmem:[%s0 + $0x10] sm:$0xf]
  %v18 = vld [vmem:[%s0 + $0x8] sm:$0x1]
  %v19 = vld [vmem:[%s0 + $0x14] sm:$0x1]
  %v20 = vld [vmem:[%s0] sm:$0xe]
  %v21 = vld [vmem:[%s0 + $0xc] sm:$0xe]
  %v22 = vld [vmem:[%s0 + $0x8] sm:$0x3]
  %v23 = vld [vmem:[%s0 + $0x14] sm:$0x3]
  %v24 = vld [vmem:[%s0] sm:$0xc]
  %v25 = vld [vmem:[%s0 + $0xc] sm:$0xc]
  %v30 = vunpack.c.l.b16 %v14
  %v31 = vunpack.c.l.b16 %v15
  %v32 = vunpack.c.l.b16 %v16
  %v33 = vunpack.c.l.b16 %v17
  %v34 = vpack.c.b16 %v31, %v30
  %v35 = vpack.c.b16 %v33, %v32
  %v40 = vunpack.c.l.b16 %v18
  %v41 = vunpack.c.l.b16 %v19
  %v42 = vpack.c.b16 %v40, %v40
  %v43 = vpack.c.b16 %v41, %v41
  %vm44 = vsmask.f32 7424
  %v46 = vshrl.u32 %v34, 16
  %v48 = vshll.u32 %v34, 16
  %v50 = vrot.slane %v48, 1
  %v51 = vor.u32 %v46, %v50
  %v53 = vshll.u32 %v42, 16
  %v55 = vrot.slane %v53, 1
  %v56 = vsel %vm44, %v51, %v55
  %v58 = vshrl.u32 %v35, 16
  %v60 = vshll.u32 %v35, 16
  %v62 = vrot.slane %v60, 1
  %v63 = vor.u32 %v58, %v62
  %v65 = vshll.u32 %v43, 16
  %v67 = vrot.slane %v65, 1
  %v68 = vsel %vm44, %v63, %v67
  %v73 = vunpack.c.l.b16 %v20
  %v74 = vunpack.c.l.b16 %v21
  %v75 = vpack.c.b16 %v31, %v73
  %v76 = vpack.c.b16 %v33, %v74
  %vm77 = vcmask 1046528
  %v78 = vrot.slane %v75, 1
  %v79 = vrot.slane %v42, 1
  %v80 = vsel %vm77, %v78, %v79
  %v81 = vrot.slane %v76, 1
  %v82 = vrot.slane %v43, 1
  %v83 = vsel %vm77, %v81, %v82
  %v88 = vunpack.c.l.b16 %v22
  %v89 = vunpack.c.l.b16 %v23
  %v90 = vpack.c.b16 %v88, %v88
  %v91 = vpack.c.b16 %v89, %v89
  %vm92 = vsmask.f32 6400
  %v94 = vshrl.u32 %v75, 16
  %v96 = vrot.slane %v94, 1
  %v97 = vshll.u32 %v75, 16
  %v99 = vrot.slane %v97, 2
  %v100 = vor.u32 %v96, %v99
  %v102 = vshrl.u32 %v90, 16
  %v104 = vrot.slane %v102, 1
  %v105 = vshll.u32 %v90, 16
  %v107 = vrot.slane %v105, 2
  %v108 = vor.u32 %v104, %v107
  %v109 = vsel %vm92, %v100, %v108
  %v111 = vshrl.u32 %v76, 16
  %v113 = vrot.slane %v111, 1
  %v114 = vshll.u32 %v76, 16
  %v116 = vrot.slane %v114, 2
  %v117 = vor.u32 %v113, %v116
  %v119 = vshrl.u32 %v91, 16
  %v121 = vrot.slane %v119, 1
  %v122 = vshll.u32 %v91, 16
  %v124 = vrot.slane %v122, 2
  %v125 = vor.u32 %v121, %v124
  %v126 = vsel %vm92, %v117, %v125
  %v131 = vunpack.c.l.b16 %v24
  %v132 = vunpack.c.l.b16 %v25
  %v133 = vpack.c.b16 %v31, %v131
  %v134 = vpack.c.b16 %v33, %v132
  %vm135 = vcmask 1045504
  %v136 = vrot.slane %v133, 2
  %v137 = vrot.slane %v90, 2
  %v138 = vsel %vm135, %v136, %v137
  %v139 = vrot.slane %v134, 2
  %v140 = vrot.slane %v91, 2
  %v141 = vsel %vm135, %v139, %v140
  %v144 = vld [vmem:[%s1] sm:$0xf]
  %v145 = vld [vmem:[%s1 + $0x4] sm:$0xf]
  %v146 = vld [vmem:[%s1 + $0x8] sm:$0xf]
  %v147 = vld [vmem:[%s1 + $0xc] sm:$0xf]
  %v148 = vld [vmem:[%s1 + $0x10] sm:$0xf]
  %v149 = vld [vmem:[%s1 + $0x14] sm:$0xf]
  %v150 = vld [vmem:[%s1 + $0x18] sm:$0xf]
  %v151 = vld [vmem:[%s1 + $0x1c] sm:$0xf]
  %v152 = vld [vmem:[%s1 + $0x20] sm:$0xf]
  %v153 = vld [vmem:[%s1 + $0x24] sm:$0xf]
  %v154 = vld [vmem:[%s1 + $0x28] sm:$0xf]
  %v155 = vld [vmem:[%s1 + $0x2c] sm:$0xf]
  %v156 = vld [vmem:[%s1 + $0x30] sm:$0xf]
  %v157 = vld [vmem:[%s1 + $0x34] sm:$0xf]
  %v158 = vld [vmem:[%s1 + $0x38] sm:$0xf]
  %v159 = vld [vmem:[%s1 + $0x3c] sm:$0xf]
  %v160 = vld [vmem:[%s1 + $0x40] sm:$0xf]
  %v161 = vld [vmem:[%s1 + $0x44] sm:$0xf]
  %v162 = vld [vmem:[%s1 + $0x48] sm:$0xf]
  %v163 = vld [vmem:[%s1 + $0x4c] sm:$0xf]
  %v164 = vld [vmem:[%s1 + $0x50] sm:$0xf]
  %v165 = vld [vmem:[%s1 + $0x54] sm:$0xf]
  %v166 = vld [vmem:[%s1 + $0x58] sm:$0xf]
  %v167 = vld [vmem:[%s1 + $0x5c] sm:$0xf]
  %v168 = vld [vmem:[%s1 + $0x60] sm:$0xf]
  %v169 = vld [vmem:[%s1 + $0x64] sm:$0xf]
  %v170 = vld [vmem:[%s1 + $0x68] sm:$0xf]
  %v171 = vld [vmem:[%s1 + $0x6c] sm:$0xf]
  %v172 = vld [vmem:[%s1 + $0x70] sm:$0xf]
  %v173 = vld [vmem:[%s1 + $0x74] sm:$0xf]
  %v174 = vld [vmem:[%s1 + $0x78] sm:$0xf]
  %v175 = vld [vmem:[%s1 + $0x7c] sm:$0xf]
  %v176 = vld [vmem:[%s1 + $0x80] sm:$0xf]
  %v177 = vld [vmem:[%s1 + $0x84] sm:$0xf]
  %v178 = vld [vmem:[%s1 + $0x88] sm:$0xf]
  %v179 = vld [vmem:[%s1 + $0x8c] sm:$0xf]
  %v180 = vld [vmem:[%s1 + $0x90] sm:$0xf]
  %v181 = vld [vmem:[%s1 + $0x94] sm:$0xf]
  %v182 = vld [vmem:[%s1 + $0x98] sm:$0xf]
  %v183 = vld [vmem:[%s1 + $0x9c] sm:$0xf]
  %v184 = vld [vmem:[%s1 + $0xa0] sm:$0xf]
  %v185 = vld [vmem:[%s1 + $0xa4] sm:$0xf]
  %v186 = vld [vmem:[%s1 + $0xa8] sm:$0xf]
  %v187 = vld [vmem:[%s1 + $0xac] sm:$0xf]
  %v188 = vld [vmem:[%s1 + $0xb0] sm:$0xf]
  %v189 = vld [vmem:[%s1 + $0xb4] sm:$0xf]
  %v190 = vld [vmem:[%s1 + $0xb8] sm:$0xf]
  %v191 = vld [vmem:[%s1 + $0xbc] sm:$0xf]
  %v192 = vld [vmem:[%s1 + $0xc0] sm:$0xf]
  %v193 = vld [vmem:[%s1 + $0xc4] sm:$0xf]
  %v194 = vld [vmem:[%s1 + $0xc8] sm:$0xf]
  %v195 = vld [vmem:[%s1 + $0xcc] sm:$0xf]
  %v196 = vld [vmem:[%s1 + $0xd0] sm:$0xf]
  %v197 = vld [vmem:[%s1 + $0xd4] sm:$0xf]
  %v198 = vld [vmem:[%s1 + $0xd8] sm:$0xf]
  %v199 = vld [vmem:[%s1 + $0xdc] sm:$0xf]
  %v200 = vld [vmem:[%s1 + $0xe0] sm:$0xf]
  %v201 = vld [vmem:[%s1 + $0xe4] sm:$0xf]
  %v202 = vld [vmem:[%s1 + $0xe8] sm:$0xf]
  %v203 = vld [vmem:[%s1 + $0xec] sm:$0xf]
  %v204 = vld [vmem:[%s1 + $0xf0] sm:$0xf]
  %v205 = vld [vmem:[%s1 + $0xf4] sm:$0xf]
  %v206 = vld [vmem:[%s1 + $0xf8] sm:$0xf]
  %v207 = vld [vmem:[%s1 + $0xfc] sm:$0xf]
  %v208 = vld [vmem:[%s1 + $0x100] sm:$0xf]
  %v209 = vld [vmem:[%s1 + $0x104] sm:$0xf]
  %v210 = vld [vmem:[%s1 + $0x108] sm:$0xf]
  %v211 = vld [vmem:[%s1 + $0x10c] sm:$0xf]
  %v212 = vld [vmem:[%s1 + $0x110] sm:$0xf]
  %v213 = vld [vmem:[%s1 + $0x114] sm:$0xf]
  %v214 = vld [vmem:[%s1 + $0x118] sm:$0xf]
  %v215 = vld [vmem:[%s1 + $0x11c] sm:$0xf]
  %v216 = vld [vmem:[%s1 + $0x120] sm:$0xf]
  %v217 = vld [vmem:[%s1 + $0x124] sm:$0xf]
  %v218 = vld [vmem:[%s1 + $0x128] sm:$0xf]
  %v219 = vld [vmem:[%s1 + $0x12c] sm:$0xf]
  %v220 = vld [vmem:[%s1 + $0x130] sm:$0xf]
  %v221 = vld [vmem:[%s1 + $0x134] sm:$0xf]
  %v222 = vld [vmem:[%s1 + $0x138] sm:$0xf]
  %v223 = vld [vmem:[%s1 + $0x13c] sm:$0xf]
  %v224 = vld [vmem:[%s2] sm:$0x1]
  %v226 = vperm.slane %v224, 0
  %v308 = vunpack.c.l.b16 %v144
  %v309 = vunpack.c.l.b16 %v145
  %v310 = vunpack.c.l.b16 %v146
  %v311 = vunpack.c.l.b16 %v147
  %v312 = vunpack.c.l.b16 %v148
  %v313 = vunpack.c.l.b16 %v149
  %v314 = vunpack.c.l.b16 %v150
  %v315 = vunpack.c.l.b16 %v151
  %v316 = vunpack.c.l.b16 %v152
  %v317 = vunpack.c.l.b16 %v153
  %v318 = vunpack.c.l.b16 %v154
  %v319 = vunpack.c.l.b16 %v155
  %v320 = vunpack.c.l.b16 %v156
  %v321 = vunpack.c.l.b16 %v157
  %v322 = vunpack.c.l.b16 %v158
  %v323 = vunpack.c.l.b16 %v159
  %v324 = vunpack.c.l.b16 %v160
  %v325 = vunpack.c.l.b16 %v161
  %v326 = vunpack.c.l.b16 %v162
  %v327 = vunpack.c.l.b16 %v163
  %v328 = vunpack.c.l.b16 %v164
  %v329 = vunpack.c.l.b16 %v165
  %v330 = vunpack.c.l.b16 %v166
  %v331 = vunpack.c.l.b16 %v167
  %v332 = vunpack.c.l.b16 %v168
  %v333 = vunpack.c.l.b16 %v169
  %v334 = vunpack.c.l.b16 %v170
  %v335 = vunpack.c.l.b16 %v171
  %v336 = vunpack.c.l.b16 %v172
  %v337 = vunpack.c.l.b16 %v173
  %v338 = vunpack.c.l.b16 %v174
  %v339 = vunpack.c.l.b16 %v175
  %v340 = vunpack.c.l.b16 %v176
  %v341 = vunpack.c.l.b16 %v177
  %v342 = vunpack.c.l.b16 %v178
  %v343 = vunpack.c.l.b16 %v179
  %v344 = vunpack.c.l.b16 %v180
  %v345 = vunpack.c.l.b16 %v181
  %v346 = vunpack.c.l.b16 %v182
  %v347 = vunpack.c.l.b16 %v183
  %v348 = vunpack.c.l.b16 %v184
  %v349 = vunpack.c.l.b16 %v185
  %v350 = vunpack.c.l.b16 %v186
  %v351 = vunpack.c.l.b16 %v187
  %v352 = vunpack.c.l.b16 %v188
  %v353 = vunpack.c.l.b16 %v189
  %v354 = vunpack.c.l.b16 %v190
  %v355 = vunpack.c.l.b16 %v191
  %v356 = vunpack.c.l.b16 %v192
  %v357 = vunpack.c.l.b16 %v193
  %v358 = vunpack.c.l.b16 %v194
  %v359 = vunpack.c.l.b16 %v195
  %v360 = vunpack.c.l.b16 %v196
  %v361 = vunpack.c.l.b16 %v197
  %v362 = vunpack.c.l.b16 %v198
  %v363 = vunpack.c.l.b16 %v199
  %v364 = vunpack.c.l.b16 %v200
  %v365 = vunpack.c.l.b16 %v201
  %v366 = vunpack.c.l.b16 %v202
  %v367 = vunpack.c.l.b16 %v203
  %v368 = vunpack.c.l.b16 %v204
  %v369 = vunpack.c.l.b16 %v205
  %v370 = vunpack.c.l.b16 %v206
  %v371 = vunpack.c.l.b16 %v207
  %v372 = vunpack.c.l.b16 %v208
  %v373 = vunpack.c.l.b16 %v209
  %v374 = vunpack.c.l.b16 %v210
  %v375 = vunpack.c.l.b16 %v211
  %v376 = vunpack.c.l.b16 %v212
  %v377 = vunpack.c.l.b16 %v213
  %v378 = vunpack.c.l.b16 %v214
  %v379 = vunpack.c.l.b16 %v215
  %v380 = vunpack.c.l.b16 %v216
  %v381 = vunpack.c.l.b16 %v217
  %v382 = vunpack.c.l.b16 %v218
  %v383 = vunpack.c.l.b16 %v219
  %v384 = vunpack.c.l.b16 %v220
  %v385 = vunpack.c.l.b16 %v221
  %v386 = vunpack.c.l.b16 %v222
  %v387 = vunpack.c.l.b16 %v223
  %v388 = vpack.c.b16 %v309, %v308
  %v389 = vpack.c.b16 %v311, %v310
  %v390 = vpack.c.b16 %v313, %v312
  %v391 = vpack.c.b16 %v315, %v314
  %v392 = vpack.c.b16 %v317, %v316
  %v393 = vpack.c.b16 %v319, %v318
  %v394 = vpack.c.b16 %v321, %v320
  %v395 = vpack.c.b16 %v323, %v322
  %v396 = vpack.c.b16 %v325, %v324
  %v397 = vpack.c.b16 %v327, %v326
  %v398 = vpack.c.b16 %v329, %v328
  %v399 = vpack.c.b16 %v331, %v330
  %v400 = vpack.c.b16 %v333, %v332
  %v401 = vpack.c.b16 %v335, %v334
  %v402 = vpack.c.b16 %v337, %v336
  %v403 = vpack.c.b16 %v339, %v338
  %v404 = vpack.c.b16 %v341, %v340
  %v405 = vpack.c.b16 %v343, %v342
  %v406 = vpack.c.b16 %v345, %v344
  %v407 = vpack.c.b16 %v347, %v346
  %v408 = vpack.c.b16 %v349, %v348
  %v409 = vpack.c.b16 %v351, %v350
  %v410 = vpack.c.b16 %v353, %v352
  %v411 = vpack.c.b16 %v355, %v354
  %v412 = vpack.c.b16 %v357, %v356
  %v413 = vpack.c.b16 %v359, %v358
  %v414 = vpack.c.b16 %v361, %v360
  %v415 = vpack.c.b16 %v363, %v362
  %v416 = vpack.c.b16 %v365, %v364
  %v417 = vpack.c.b16 %v367, %v366
  %v418 = vpack.c.b16 %v369, %v368
  %v419 = vpack.c.b16 %v371, %v370
  %v420 = vpack.c.b16 %v373, %v372
  %v421 = vpack.c.b16 %v375, %v374
  %v422 = vpack.c.b16 %v377, %v376
  %v423 = vpack.c.b16 %v379, %v378
  %v424 = vpack.c.b16 %v381, %v380
  %v425 = vpack.c.b16 %v383, %v382
  %v426 = vpack.c.b16 %v385, %v384
  %v427 = vpack.c.b16 %v387, %v386
  %468 = vmatpush.bf16.msra.mxu0 %v395
  %469 = vmatpush.bf16.msra.mxu0 %v394
  %470 = vmatpush.bf16.msra.mxu0 %v393
  %471 = vmatpush.bf16.msra.mxu0 %v392
  %472 = vmatpush.bf16.msra.mxu0 %v391
  %473 = vmatpush.bf16.msra.mxu0 %v390
  %474 = vmatpush.bf16.msra.mxu0 %v389
  %475 = vmatpush.bf16.msra.mxu0 %v388
  %476 = vmatmul.bf16.gmra.mxu0 %v34
  %v477 = vpop.f32.mrf.mxu0
  %v478 = vadd.f32 %v226, %v477
  %v479 = vpop.f32.mrf.mxu0
  %v480 = vadd.f32 %v226, %v479
  %481 = vmatmul.bf16.gmra.mxu0 %v35
  %v482 = vpop.f32.mrf.mxu0
  %v483 = vadd.f32 %v226, %v482
  %v484 = vpop.f32.mrf.mxu0
  %v485 = vadd.f32 %v226, %v484
  %486 = vdwg.mxu0
  %487 = vmatpush.bf16.msra.mxu0 %v403
  %488 = vmatpush.bf16.msra.mxu0 %v402
  %489 = vmatpush.bf16.msra.mxu0 %v401
  %490 = vmatpush.bf16.msra.mxu0 %v400
  %491 = vmatpush.bf16.msra.mxu0 %v399
  %492 = vmatpush.bf16.msra.mxu0 %v398
  %493 = vmatpush.bf16.msra.mxu0 %v397
  %494 = vmatpush.bf16.msra.mxu0 %v396
  %495 = vmatmul.bf16.gmra.mxu0 %v56
  %v496 = vpop.f32.mrf.mxu0
  %v497 = vadd.f32 %v478, %v496
  %v498 = vpop.f32.mrf.mxu0
  %v499 = vadd.f32 %v480, %v498
  %500 = vmatmul.bf16.gmra.mxu0 %v68
  %v501 = vpop.f32.mrf.mxu0
  %v502 = vadd.f32 %v483, %v501
  %v503 = vpop.f32.mrf.mxu0
  %v504 = vadd.f32 %v485, %v503
  %505 = vdwg.mxu0
  %506 = vmatpush.bf16.msra.mxu0 %v411
  %507 = vmatpush.bf16.msra.mxu0 %v410
  %508 = vmatpush.bf16.msra.mxu0 %v409
  %509 = vmatpush.bf16.msra.mxu0 %v408
  %510 = vmatpush.bf16.msra.mxu0 %v407
  %511 = vmatpush.bf16.msra.mxu0 %v406
  %512 = vmatpush.bf16.msra.mxu0 %v405
  %513 = vmatpush.bf16.msra.mxu0 %v404
  %514 = vmatmul.bf16.gmra.mxu0 %v80
  %v515 = vpop.f32.mrf.mxu0
  %v516 = vadd.f32 %v497, %v515
  %v517 = vpop.f32.mrf.mxu0
  %v518 = vadd.f32 %v499, %v517
  %519 = vmatmul.bf16.gmra.mxu0 %v83
  %v520 = vpop.f32.mrf.mxu0
  %v521 = vadd.f32 %v502, %v520
  %v522 = vpop.f32.mrf.mxu0
  %v523 = vadd.f32 %v504, %v522
  %524 = vdwg.mxu0
  %525 = vmatpush.bf16.msra.mxu0 %v419
  %526 = vmatpush.bf16.msra.mxu0 %v418
  %527 = vmatpush.bf16.msra.mxu0 %v417
  %528 = vmatpush.bf16.msra.mxu0 %v416
  %529 = vmatpush.bf16.msra.mxu0 %v415
  %530 = vmatpush.bf16.msra.mxu0 %v414
  %531 = vmatpush.bf16.msra.mxu0 %v413
  %532 = vmatpush.bf16.msra.mxu0 %v412
  %533 = vmatmul.bf16.gmra.mxu0 %v109
  %v534 = vpop.f32.mrf.mxu0
  %v535 = vadd.f32 %v516, %v534
  %v536 = vpop.f32.mrf.mxu0
  %v537 = vadd.f32 %v518, %v536
  %538 = vmatmul.bf16.gmra.mxu0 %v126
  %v539 = vpop.f32.mrf.mxu0
  %v540 = vadd.f32 %v521, %v539
  %v541 = vpop.f32.mrf.mxu0
  %v542 = vadd.f32 %v523, %v541
  %543 = vdwg.mxu0
  %544 = vmatpush.bf16.msra.mxu0 %v427
  %545 = vmatpush.bf16.msra.mxu0 %v426
  %546 = vmatpush.bf16.msra.mxu0 %v425
  %547 = vmatpush.bf16.msra.mxu0 %v424
  %548 = vmatpush.bf16.msra.mxu0 %v423
  %549 = vmatpush.bf16.msra.mxu0 %v422
  %550 = vmatpush.bf16.msra.mxu0 %v421
  %551 = vmatpush.bf16.msra.mxu0 %v420
  %552 = vmatmul.bf16.gmra.mxu0 %v138
  %v553 = vpop.f32.mrf.mxu0
  %v554 = vadd.f32 %v535, %v553
  %v555 = vpop.f32.mrf.mxu0
  %v556 = vadd.f32 %v537, %v555
  %557 = vmatmul.bf16.gmra.mxu0 %v141
  %v558 = vpop.f32.mrf.mxu0
  %v559 = vadd.f32 %v540, %v558
  %v560 = vpop.f32.mrf.mxu0
  %v561 = vadd.f32 %v542, %v560
  %562 = vdwg.mxu0
  %v563 = vmax.f32 %v554, 0.0
  %v564 = vmax.f32 %v556, 0.0
  %v565 = vmax.f32 %v559, 0.0
  %v566 = vmax.f32 %v561, 0.0
  %567 = vst [vmem:[%s3] sm:$0xff] %v563
  %568 = vst [vmem:[%s3 + $0x8] sm:$0xff] %v564
  %569 = vst [vmem:[%s3 + $0x10] sm:$0xff] %v565
  %570 = vst [vmem:[%s3 + $0x18] sm:$0xff] %v566
  // Predicated region
  $region14: #{conv_multi_forward.1} parent=0 // pred_check
    _
  $region15: #{conv_multi_forward.1} parent=0 // pred_check_branch
    %572 = sbr.rel (0) target = $region17
  $region16: #{conv_multi_forward.1} parent=0 // pred_region
    _
  $region17: #{conv_multi_forward.1} parent=0 // pred_fallthru
    _
  // Predicated region
  $region18: #{conv_multi_forward.1} parent=0 // pred_check
    _
  $region19: #{conv_multi_forward.1} parent=0 // pred_check_branch
    %574 = sbr.rel (0) target = $region21
  $region20: #{conv_multi_forward.1} parent=0 // pred_region
    _
  $region21: #{conv_multi_forward.1} parent=0 // pred_fallthru
    _

</llo_original>
